<compile_context>
chip_gen: v7x
topology: tpu7x:2x2x1
jax: 0.10.0
libtpu: 0.0.40
codegen_flags: <defaults>
</compile_context>

<pallas_src>
import functools

import numpy as np
import jax
import jax.numpy as jnp
from jax.experimental import pallas as pl
from jax.experimental.pallas import tpu as pltpu

_RMS_EPS = 1e-8
_QMAX = 127.0


# ----------------------------------------------------------------------------- helpers
def _round_up(x, m):
    return ((x + m - 1) // m) * m


def _weight_quant(w):
    """mmfreelm ternary weight quantization (per-tensor mean-abs scale). Host-side."""
    scale = 1.0 / jnp.maximum(jnp.mean(jnp.abs(w)), 1e-5)
    return jnp.clip(jnp.round(w * scale), -1.0, 1.0) / scale


def _rms_act_quant(v):
    """Reference BitLinear front-end: RMSNorm (unit weight) + per-token 8-bit absmax quant."""
    rms = jax.lax.rsqrt(jnp.mean(v * v, axis=-1, keepdims=True) + _RMS_EPS)
    vn = v * rms
    scale = _QMAX / jnp.maximum(jnp.max(jnp.abs(vn), axis=-1, keepdims=True), 1e-5)
    return jnp.clip(jnp.round(vn * scale), -128.0, _QMAX) / scale


def _act_quant_int(v):
    """In-kernel BitLinear front end, integer-valued variant.

    Returns (q, inv_s): q are absmax-quantized integer activation values (exact in
    bf16, so the MXU matmul is exact integer arithmetic) and inv_s is the per-token
    dequant factor applied AFTER the matmul (identical math, fewer f32 operands)."""
    rms = jax.lax.rsqrt(jnp.mean(v * v, axis=-1, keepdims=True) + _RMS_EPS)
    vn = v * rms
    amax = jnp.maximum(jnp.max(jnp.abs(vn), axis=-1, keepdims=True), 1e-5)
    s = _QMAX * pl.reciprocal(amax, approx=True)          # EUP slot, nearly free
    q = jnp.clip(jnp.round(vn * s), -128.0, _QMAX)
    inv_s = amax * (1.0 / _QMAX)
    return q, inv_s


# ----------------------------------------------------------------------------- kernel
def _fff_kernel(x_ref, w13_ref, w2_ref, a_ref, b_ref, e_ref, o_ref, *,
                depth, hidden_width):
    x = x_ref[...].astype(jnp.float32)                               # (TB, D)

    # layer1 + layer3 share one BitLinear input transform and one fused MXU matmul.
    qx, inv_sx = _act_quant_int(x)
    co = jnp.dot(qx.astype(jnp.bfloat16), w13_ref[...],
                 preferred_element_type=jnp.float32)                 # (TB, H + nn_pad)
    hidden = jnp.maximum(co[:, :hidden_width], 0.0) * inv_sx         # ReLU activation
    gate_logits = co[:, hidden_width:] * inv_sx                      # (TB, nn_pad)
    sig = jax.nn.sigmoid(gate_logits)

    # Binary-tree gating at leaf width, then a single 0/1 expansion matmul to hidden
    # width.  a/b are host-built per-level select matrices (padded columns are zero),
    # e is the leaf->hidden expansion matrix.  Initialized from the first level
    # factor (no ones() materialization).
    mix = b_ref[0] + jnp.dot(sig, a_ref[0], preferred_element_type=jnp.float32)
    for d in range(1, depth):
        mix = mix * (b_ref[d] + jnp.dot(sig, a_ref[d],
                                        preferred_element_type=jnp.float32))
    gate_full = jnp.dot(mix, e_ref[...], preferred_element_type=jnp.float32)
    gated = hidden * gate_full                                       # (TB, H)

    # layer2 BitLinear.
    qg, inv_sg = _act_quant_int(gated)
    out = jnp.dot(qg.astype(jnp.bfloat16), w2_ref[...],
                  preferred_element_type=jnp.float32) * inv_sg       # (TB, D)
    o_ref[...] = out.astype(o_ref.dtype)


# ----------------------------------------------------------------------------- wrapper
def modified_fff(x, w1, w2, w3, *, depth, block_tokens=256):
    """x: (..., D); w1: (H, D); w2: (D, H); w3: (2**depth - 1, D)."""
    input_width = x.shape[-1]
    hidden_width = w1.shape[0]
    n_leaves = 2 ** depth
    assert hidden_width % n_leaves == 0
    hpl = hidden_width // n_leaves
    nn_nodes = n_leaves - 1
    nn_pad = _round_up(nn_nodes, 128)       # lane-dense gate-logit slab
    nl_pad = _round_up(n_leaves, 128)       # lane-dense leaf mixture

    orig_shape = x.shape
    out_dtype = x.dtype                     # dtype-preserving (bf16 in => bf16 stream)
    xf = x.reshape(-1, input_width)
    n_tok = xf.shape[0]

    # Token tile: as large as block_tokens allows, but keep >= 2 grid steps when
    # possible so both v7x TensorCores get work.
    tb = min(block_tokens, _round_up(n_tok, 8))
    if n_tok > 8 and -(-n_tok // tb) < 2:
        tb = _round_up(-(-n_tok // 2), 8)
    n_pad = (-n_tok) % tb
    if n_pad:
        xf = jnp.pad(xf, ((0, n_pad), (0, 0)))
    n_tok_p = xf.shape[0]
    grid = n_tok_p // tb

    # Ternary (dequantized) weights in bf16, pre-transposed.  layer1 / layer3 fused
    # along the output axis; each is quantized with its OWN per-tensor scale first.
    w1t = _weight_quant(w1).T.astype(jnp.bfloat16)                    # (D, H)
    w2t = _weight_quant(w2).T.astype(jnp.bfloat16)                    # (H, D)
    w3t = _weight_quant(w3).T.astype(jnp.bfloat16)                    # (D, nn)
    w3t = jnp.pad(w3t, ((0, 0), (0, nn_pad - nn_nodes)))
    w13 = jnp.concatenate([w1t, w3t], axis=1)                         # (D, H + nn_pad)

    # Host-built select matrices (leaf width) and 0/1 expansion matrix:
    #   mix[:, l] = prod_d ( b[d, 0, l] + sig @ a[d, :, l] ),  gate = mix @ e.
    a = np.zeros((depth, nn_pad, nl_pad), np.float32)
    b = np.zeros((depth, 1, nl_pad), np.float32)
    for d in range(depth):
        for leaf in range(n_leaves):
            node = 2 ** d - 1 + (leaf >> (depth - d))
            go_right = (leaf >> (depth - d - 1)) & 1
            if go_right:
                a[d, node, leaf] = 1.0              # factor = sigmoid(node)
            else:
                a[d, node, leaf] = -1.0             # factor = 1 - sigmoid(node)
                b[d, 0, leaf] = 1.0
    e = np.zeros((nl_pad, hidden_width), np.float32)
    for leaf in range(n_leaves):
        e[leaf, leaf * hpl:(leaf + 1) * hpl] = 1.0
    a = jnp.asarray(a)
    b = jnp.asarray(b)
    e = jnp.asarray(e)

    itemsize_x = jnp.dtype(xf.dtype).itemsize
    itemsize_o = jnp.dtype(out_dtype).itemsize
    cost = pl.CostEstimate(
        flops=int(2 * n_tok_p * (input_width * (hidden_width + nn_pad)
                                 + nl_pad * hidden_width
                                 + depth * nn_pad * nl_pad
                                 + hidden_width * input_width)),
        transcendentals=int(n_tok_p * (nn_pad + 4)),
        bytes_accessed=int(xf.size * itemsize_x
                           + n_tok_p * input_width * itemsize_o
                           + w13.size * 2 + w2t.size * 2
                           + (a.size + b.size + e.size) * 4),
    )

    out = pl.pallas_call(
        functools.partial(_fff_kernel, depth=depth, hidden_width=hidden_width),
        out_shape=jax.ShapeDtypeStruct((n_tok_p, input_width), out_dtype),
        grid_spec=pltpu.PrefetchScalarGridSpec(
            num_scalar_prefetch=0,
            grid=(grid,),
            in_specs=[
                pl.BlockSpec((tb, input_width), lambda i: (i, 0)),
                pl.BlockSpec((input_width, hidden_width + nn_pad), lambda i: (0, 0)),
                pl.BlockSpec((hidden_width, input_width), lambda i: (0, 0)),
                pl.BlockSpec((depth, nn_pad, nl_pad), lambda i: (0, 0, 0)),
                pl.BlockSpec((depth, 1, nl_pad), lambda i: (0, 0, 0)),
                pl.BlockSpec((nl_pad, hidden_width), lambda i: (0, 0)),
            ],
            out_specs=pl.BlockSpec((tb, input_width), lambda i: (i, 0)),
        ),
        compiler_params=pltpu.CompilerParams(dimension_semantics=("parallel",)),
        cost_estimate=cost,
    )(xf, w13, w2t, a, b, e)

    out = out[:n_tok]
    return out.reshape(*orig_shape[:-1], input_width)


# ----------------------------------------------------------------------------- reference
def modified_fff_reference(x, w1, w2, w3, *, depth):
    """Pure-JAX reference matching the PyTorch forward (incl. tree gating loop)."""
    input_width = x.shape[-1]
    xf = x.reshape(-1, input_width).astype(jnp.float32)
    bsz = xf.shape[0]
    n_leaves = 2 ** depth

    xq = _rms_act_quant(xf)
    hidden = jnp.maximum(xq @ _weight_quant(w1).T, 0.0)
    g = xq @ _weight_quant(w3).T

    mix = jnp.ones((bsz, n_leaves), jnp.float32)
    for d in range(depth):
        platform = 2 ** d - 1
        nxt = 2 ** (d + 1) - 1
        n_nodes = 2 ** d
        be = jax.nn.sigmoid(g[:, platform:nxt])
        mod = jnp.stack([1.0 - be, be], axis=-1).reshape(bsz, 2 * n_nodes, 1)
        mix = (mix.reshape(bsz, 2 * n_nodes, n_leaves // (2 * n_nodes)) * mod
               ).reshape(bsz, n_leaves)

    hpl = w1.shape[0] // n_leaves
    gate = jnp.repeat(mix, hpl, axis=-1)
    gated = hidden * gate
    gq = _rms_act_quant(gated)
    out = gq @ _weight_quant(w2).T
    return out.reshape(*x.shape[:-1], input_width)


# ----------------------------------------------------------------------------- main
if __name__ == "__main__":
    batch, seq = 2, 8
    hidden_size, intermediate_size, depth = 32, 64, 2     # intermediate % 2**depth == 0
    n_leaves = 2 ** depth

    key = jax.random.PRNGKey(0)
    kx, k1, k2, k3 = jax.random.split(key, 4)
    x = jax.random.normal(kx, (batch, seq, hidden_size), jnp.float32)
    # Deterministic synthetic BitLinear weights (out_features, in_features), no bias.
    w1 = 0.02 * jax.random.normal(k1, (intermediate_size, hidden_size), jnp.float32)
    w2 = 0.02 * jax.random.normal(k2, (hidden_size, intermediate_size), jnp.float32)
    w3 = 0.02 * jax.random.normal(k3, (n_leaves - 1, hidden_size), jnp.float32)

    out = modified_fff(x, w1, w2, w3, depth=depth)
    out = jax.block_until_ready(out)

    ref = jax.block_until_ready(modified_fff_reference(x, w1, w2, w3, depth=depth))

    assert out.shape == (batch, seq, hidden_size), out.shape
    assert bool(jnp.all(jnp.isfinite(out)))
    np.testing.assert_allclose(np.asarray(out), np.asarray(ref), rtol=2e-2, atol=2e-2)

    print("KERNEL_OK")
</pallas_src>

<mosaic_0001>
module attributes {stable_mosaic.version = 11 : i64} {
  func.func @_fff_kernel(%arg0: i32, %arg1: memref<8x32xf32, #tpu.memory_space<vmem>>, %arg2: memref<32x192xbf16, #tpu.memory_space<vmem>>, %arg3: memref<64x32xbf16, #tpu.memory_space<vmem>>, %arg4: memref<2x128x128xf32, #tpu.memory_space<vmem>>, %arg5: memref<2x1x128xf32, #tpu.memory_space<vmem>>, %arg6: memref<128x64xf32, #tpu.memory_space<vmem>>, %arg7: memref<8x32xf32, #tpu.memory_space<vmem>>) attributes {dimension_semantics = [#tpu.dimension_semantics<parallel>], iteration_bounds = array<i64: 2>, scalar_prefetch = 0 : i64, scratch_operands = 0 : i64, tpu.core_type = #tpu.core_type<tc>, window_params = [{transform_indices = @transform_0, window_bounds = array<i64: 8, 32>}, {pipeline_mode = #tpu.pipeline_mode<synchronous>, transform_indices = @transform_1, window_bounds = array<i64: 32, 192>}, {pipeline_mode = #tpu.pipeline_mode<synchronous>, transform_indices = @transform_2, window_bounds = array<i64: 64, 32>}, {pipeline_mode = #tpu.pipeline_mode<synchronous>, transform_indices = @transform_3, window_bounds = array<i64: 2, 128, 128>}, {pipeline_mode = #tpu.pipeline_mode<synchronous>, transform_indices = @transform_4, window_bounds = array<i64: 2, 1, 128>}, {pipeline_mode = #tpu.pipeline_mode<synchronous>, transform_indices = @transform_5, window_bounds = array<i64: 128, 64>}, {transform_indices = @transform_6, window_bounds = array<i64: 8, 32>}]} {
    %c0 = arith.constant 0 : index
    %c0_0 = arith.constant 0 : index
    %0 = vector.load %arg1[%c0, %c0_0] : memref<8x32xf32, #tpu.memory_space<vmem>>, vector<8x32xf32>
    %1 = arith.mulf %0, %0 : vector<8x32xf32>
    %cst = arith.constant dense<0.000000e+00> : vector<8xf32>
    %2 = vector.multi_reduction <add>, %1, %cst [1] : vector<8x32xf32> to vector<8xf32>
    %3 = vector.shape_cast %2 : vector<8xf32> to vector<8x1xf32>
    %cst_1 = arith.constant 3.200000e+01 : f32
    %4 = vector.broadcast %cst_1 : f32 to vector<8x1xf32>
    %5 = arith.divf %3, %4 : vector<8x1xf32>
    %cst_2 = arith.constant 9.99999993E-9 : f32
    %6 = vector.broadcast %cst_2 : f32 to vector<8x1xf32>
    %7 = arith.addf %5, %6 : vector<8x1xf32>
    %8 = math.rsqrt %7 : vector<8x1xf32>
    %9 = vector.broadcast %8 : vector<8x1xf32> to vector<8x32xf32>
    %10 = arith.mulf %0, %9 : vector<8x32xf32>
    %11 = math.absf %10 : vector<8x32xf32>
    %cst_3 = arith.constant dense<0xFF800000> : vector<8xf32>
    %12 = vector.multi_reduction <maximumf>, %11, %cst_3 [1] : vector<8x32xf32> to vector<8xf32>
    %13 = vector.shape_cast %12 : vector<8xf32> to vector<8x1xf32>
    %cst_4 = arith.constant 9.99999974E-6 : f32
    %14 = vector.broadcast %cst_4 : f32 to vector<8x1xf32>
    %15 = arith.maximumf %13, %14 : vector<8x1xf32>
    %16 = tpu.reciprocal %15 {approx = true} : vector<8x1xf32> -> vector<8x1xf32>
    %cst_5 = arith.constant 1.270000e+02 : f32
    %17 = vector.broadcast %cst_5 : f32 to vector<8x1xf32>
    %18 = arith.mulf %17, %16 : vector<8x1xf32>
    %19 = vector.broadcast %18 : vector<8x1xf32> to vector<8x32xf32>
    %20 = arith.mulf %10, %19 : vector<8x32xf32>
    %21 = math.roundeven %20 : vector<8x32xf32>
    %cst_6 = arith.constant -1.280000e+02 : f32
    %cst_7 = arith.constant 1.270000e+02 : f32
    %22 = vector.broadcast %cst_6 : f32 to vector<8x32xf32>
    %23 = arith.maximumf %22, %21 : vector<8x32xf32>
    %24 = vector.broadcast %cst_7 : f32 to vector<8x32xf32>
    %25 = arith.minimumf %24, %23 : vector<8x32xf32>
    %cst_8 = arith.constant 0.00787401571 : f32
    %26 = vector.broadcast %cst_8 : f32 to vector<8x1xf32>
    %27 = arith.mulf %15, %26 : vector<8x1xf32>
    %28 = arith.truncf %25 : vector<8x32xf32> to vector<8x32xbf16>
    %c0_9 = arith.constant 0 : index
    %c0_10 = arith.constant 0 : index
    %29 = vector.load %arg2[%c0_9, %c0_10] : memref<32x192xbf16, #tpu.memory_space<vmem>>, vector<32x192xbf16>
    %cst_11 = arith.constant dense<0.000000e+00> : vector<8x192xf32>
    %30 = tpu.matmul %28, %29, %cst_11 {dimension_numbers = #tpu.dot_dimension_numbers<[1], [0], [0], [1], [0, 0, 1, 1], [], []>} : vector<8x32xbf16>, vector<32x192xbf16>, vector<8x192xf32> -> vector<8x192xf32>
    %31 = vector.extract_strided_slice %30 {offsets = [0, 0], sizes = [8, 64], strides = [1, 1]} : vector<8x192xf32> to vector<8x64xf32>
    %cst_12 = arith.constant 0.000000e+00 : f32
    %32 = vector.broadcast %cst_12 : f32 to vector<8x64xf32>
    %33 = arith.maximumf %31, %32 : vector<8x64xf32>
    %34 = vector.broadcast %27 : vector<8x1xf32> to vector<8x64xf32>
    %35 = arith.mulf %33, %34 : vector<8x64xf32>
    %36 = vector.extract_strided_slice %30 {offsets = [0, 64], sizes = [8, 128], strides = [1, 1]} : vector<8x192xf32> to vector<8x128xf32>
    %37 = vector.broadcast %27 : vector<8x1xf32> to vector<8x128xf32>
    %38 = arith.mulf %36, %37 : vector<8x128xf32>
    %39 = arith.negf %38 : vector<8x128xf32>
    %40 = math.exp %39 : vector<8x128xf32>
    %cst_13 = arith.constant 1.000000e+00 : f32
    %41 = vector.broadcast %cst_13 : f32 to vector<8x128xf32>
    %42 = arith.addf %41, %40 : vector<8x128xf32>
    %43 = arith.divf %41, %42 : vector<8x128xf32>
    %c0_14 = arith.constant 0 : index
    %c0_15 = arith.constant 0 : index
    %c0_16 = arith.constant 0 : index
    %44 = vector.load %arg5[%c0_14, %c0_15, %c0_16] : memref<2x1x128xf32, #tpu.memory_space<vmem>>, vector<1x1x128xf32>
    %45 = vector.shape_cast %44 : vector<1x1x128xf32> to vector<1x128xf32>
    %c0_17 = arith.constant 0 : index
    %c0_18 = arith.constant 0 : index
    %c0_19 = arith.constant 0 : index
    %46 = vector.load %arg4[%c0_17, %c0_18, %c0_19] : memref<2x128x128xf32, #tpu.memory_space<vmem>>, vector<1x128x128xf32>
    %47 = vector.shape_cast %46 : vector<1x128x128xf32> to vector<128x128xf32>
    %cst_20 = arith.constant dense<0.000000e+00> : vector<8x128xf32>
    %48 = tpu.matmul %43, %47, %cst_20 {dimension_numbers = #tpu.dot_dimension_numbers<[1], [0], [0], [1], [0, 0, 1, 1], [], []>} : vector<8x128xf32>, vector<128x128xf32>, vector<8x128xf32> -> vector<8x128xf32>
    %49 = vector.broadcast %45 : vector<1x128xf32> to vector<8x128xf32>
    %50 = arith.addf %49, %48 : vector<8x128xf32>
    %c1 = arith.constant 1 : index
    %c0_21 = arith.constant 0 : index
    %c0_22 = arith.constant 0 : index
    %51 = vector.load %arg5[%c1, %c0_21, %c0_22] : memref<2x1x128xf32, #tpu.memory_space<vmem>>, vector<1x1x128xf32>
    %52 = vector.shape_cast %51 : vector<1x1x128xf32> to vector<1x128xf32>
    %c1_23 = arith.constant 1 : index
    %c0_24 = arith.constant 0 : index
    %c0_25 = arith.constant 0 : index
    %53 = vector.load %arg4[%c1_23, %c0_24, %c0_25] : memref<2x128x128xf32, #tpu.memory_space<vmem>>, vector<1x128x128xf32>
    %54 = vector.shape_cast %53 : vector<1x128x128xf32> to vector<128x128xf32>
    %cst_26 = arith.constant dense<0.000000e+00> : vector<8x128xf32>
    %55 = tpu.matmul %43, %54, %cst_26 {dimension_numbers = #tpu.dot_dimension_numbers<[1], [0], [0], [1], [0, 0, 1, 1], [], []>} : vector<8x128xf32>, vector<128x128xf32>, vector<8x128xf32> -> vector<8x128xf32>
    %56 = vector.broadcast %52 : vector<1x128xf32> to vector<8x128xf32>
    %57 = arith.addf %56, %55 : vector<8x128xf32>
    %58 = arith.mulf %50, %57 : vector<8x128xf32>
    %c0_27 = arith.constant 0 : index
    %c0_28 = arith.constant 0 : index
    %59 = vector.load %arg6[%c0_27, %c0_28] : memref<128x64xf32, #tpu.memory_space<vmem>>, vector<128x64xf32>
    %cst_29 = arith.constant dense<0.000000e+00> : vector<8x64xf32>
    %60 = tpu.matmul %58, %59, %cst_29 {dimension_numbers = #tpu.dot_dimension_numbers<[1], [0], [0], [1], [0, 0, 1, 1], [], []>} : vector<8x128xf32>, vector<128x64xf32>, vector<8x64xf32> -> vector<8x64xf32>
    %61 = arith.mulf %35, %60 : vector<8x64xf32>
    %62 = arith.mulf %61, %61 : vector<8x64xf32>
    %cst_30 = arith.constant dense<0.000000e+00> : vector<8xf32>
    %63 = vector.multi_reduction <add>, %62, %cst_30 [1] : vector<8x64xf32> to vector<8xf32>
    %64 = vector.shape_cast %63 : vector<8xf32> to vector<8x1xf32>
    %cst_31 = arith.constant 6.400000e+01 : f32
    %65 = vector.broadcast %cst_31 : f32 to vector<8x1xf32>
    %66 = arith.divf %64, %65 : vector<8x1xf32>
    %cst_32 = arith.constant 9.99999993E-9 : f32
    %67 = vector.broadcast %cst_32 : f32 to vector<8x1xf32>
    %68 = arith.addf %66, %67 : vector<8x1xf32>
    %69 = math.rsqrt %68 : vector<8x1xf32>
    %70 = vector.broadcast %69 : vector<8x1xf32> to vector<8x64xf32>
    %71 = arith.mulf %61, %70 : vector<8x64xf32>
    %72 = math.absf %71 : vector<8x64xf32>
    %cst_33 = arith.constant dense<0xFF800000> : vector<8xf32>
    %73 = vector.multi_reduction <maximumf>, %72, %cst_33 [1] : vector<8x64xf32> to vector<8xf32>
    %74 = vector.shape_cast %73 : vector<8xf32> to vector<8x1xf32>
    %cst_34 = arith.constant 9.99999974E-6 : f32
    %75 = vector.broadcast %cst_34 : f32 to vector<8x1xf32>
    %76 = arith.maximumf %74, %75 : vector<8x1xf32>
    %77 = tpu.reciprocal %76 {approx = true} : vector<8x1xf32> -> vector<8x1xf32>
    %cst_35 = arith.constant 1.270000e+02 : f32
    %78 = vector.broadcast %cst_35 : f32 to vector<8x1xf32>
    %79 = arith.mulf %78, %77 : vector<8x1xf32>
    %80 = vector.broadcast %79 : vector<8x1xf32> to vector<8x64xf32>
    %81 = arith.mulf %71, %80 : vector<8x64xf32>
    %82 = math.roundeven %81 : vector<8x64xf32>
    %cst_36 = arith.constant -1.280000e+02 : f32
    %cst_37 = arith.constant 1.270000e+02 : f32
    %83 = vector.broadcast %cst_36 : f32 to vector<8x64xf32>
    %84 = arith.maximumf %83, %82 : vector<8x64xf32>
    %85 = vector.broadcast %cst_37 : f32 to vector<8x64xf32>
    %86 = arith.minimumf %85, %84 : vector<8x64xf32>
    %cst_38 = arith.constant 0.00787401571 : f32
    %87 = vector.broadcast %cst_38 : f32 to vector<8x1xf32>
    %88 = arith.mulf %76, %87 : vector<8x1xf32>
    %89 = arith.truncf %86 : vector<8x64xf32> to vector<8x64xbf16>
    %c0_39 = arith.constant 0 : index
    %c0_40 = arith.constant 0 : index
    %90 = vector.load %arg3[%c0_39, %c0_40] : memref<64x32xbf16, #tpu.memory_space<vmem>>, vector<64x32xbf16>
    %cst_41 = arith.constant dense<0.000000e+00> : vector<8x32xf32>
    %91 = tpu.matmul %89, %90, %cst_41 {dimension_numbers = #tpu.dot_dimension_numbers<[1], [0], [0], [1], [0, 0, 1, 1], [], []>} : vector<8x64xbf16>, vector<64x32xbf16>, vector<8x32xf32> -> vector<8x32xf32>
    %92 = vector.broadcast %88 : vector<8x1xf32> to vector<8x32xf32>
    %93 = arith.mulf %91, %92 : vector<8x32xf32>
    %c0_42 = arith.constant 0 : index
    %c0_43 = arith.constant 0 : index
    %94 = vector.load %arg7[%c0_42, %c0_43] : memref<8x32xf32, #tpu.memory_space<vmem>>, vector<8x32xf32>
    tpu.vector_store %arg7[%c0_42, %c0_43], %93 {strides = array<i32>} : memref<8x32xf32, #tpu.memory_space<vmem>>, vector<8x32xf32>,
    return
  }
  func.func @transform_0(%arg0: i32) -> (i32, i32) {
    %c0_i32 = arith.constant 0 : i32
    %c0_i32_0 = arith.constant 0 : i32
    return %arg0, %c0_i32 : i32, i32
  }
  func.func @transform_1(%arg0: i32) -> (i32, i32) {
    %c0_i32 = arith.constant 0 : i32
    %c0_i32_0 = arith.constant 0 : i32
    %c0_i32_1 = arith.constant 0 : i32
    return %c0_i32, %c0_i32_0 : i32, i32
  }
  func.func @transform_2(%arg0: i32) -> (i32, i32) {
    %c0_i32 = arith.constant 0 : i32
    %c0_i32_0 = arith.constant 0 : i32
    %c0_i32_1 = arith.constant 0 : i32
    return %c0_i32, %c0_i32_0 : i32, i32
  }
  func.func @transform_3(%arg0: i32) -> (i32, i32, i32) {
    %c0_i32 = arith.constant 0 : i32
    %c0_i32_0 = arith.constant 0 : i32
    %c0_i32_1 = arith.constant 0 : i32
    %c0_i32_2 = arith.constant 0 : i32
    return %c0_i32, %c0_i32_0, %c0_i32_1 : i32, i32, i32
  }
  func.func @transform_4(%arg0: i32) -> (i32, i32, i32) {
    %c0_i32 = arith.constant 0 : i32
    %c0_i32_0 = arith.constant 0 : i32
    %c0_i32_1 = arith.constant 0 : i32
    %c0_i32_2 = arith.constant 0 : i32
    return %c0_i32, %c0_i32_0, %c0_i32_1 : i32, i32, i32
  }
  func.func @transform_5(%arg0: i32) -> (i32, i32) {
    %c0_i32 = arith.constant 0 : i32
    %c0_i32_0 = arith.constant 0 : i32
    %c0_i32_1 = arith.constant 0 : i32
    return %c0_i32, %c0_i32_0 : i32, i32
  }
  func.func @transform_6(%arg0: i32) -> (i32, i32) {
    %c0_i32 = arith.constant 0 : i32
    %c0_i32_0 = arith.constant 0 : i32
    return %arg0, %c0_i32 : i32, i32
  }
}

</mosaic_0001>

<llo_original>
// kernel: tpu_custom_call.1
$region0: #{tpu_custom_call.1}
  #allocation0 [shape = 'u32[]', space=smem, size = 0x4, offset = 0x4, fixed_abs, tag = 'smem constant byte address 0x4 - core index']
  #allocation1 [shape = 'u32[144,128]{1,0:T(1,128)}', space=vmem, size = 0x12000, scoped, tag = 'internal scratch']
  %s0 = inlined_call_operand.vmem [shape: f32[16,32], index: 0, kind: input, shape index: {}]
  %s1 = inlined_call_operand.vmem [shape: bf16[32,192], index: 1, kind: input, shape index: {}]
  %s2 = inlined_call_operand.vmem [shape: bf16[64,32], index: 2, kind: input, shape index: {}]
  %s3 = inlined_call_operand.hbm [shape: f32[2,128,128], index: 3, kind: input, shape index: {}]
  %s4 = inlined_call_operand.vmem [shape: f32[2,1,128], index: 4, kind: input, shape index: {}]
  %s5 = inlined_call_operand.vmem [shape: f32[128,64], index: 5, kind: input, shape index: {}]
  %s6 = inlined_call_operand.hbm [shape: f32[16,32], index: 6, kind: output, shape index: {}]
  %s7 = sld [smem:[#allocation0]]
  $region61: #{tpu_custom_call.1} parent=0
    _
  %s9 = ssub.s32 1, %s7
  %s10 = scalar_select 0, %s9, %s7
  $region1: #{tpu_custom_call.1} parent=0
    #allocation2 [shape = 'u8[131072]{0}', space=vmem, size = 0x20000, scoped, tag = 'input window, operand 3, single buffered']
    #allocation3 [shape = 's32[2]{0}', space=sflag, size = 0x8, scoped, tag = 'scoped memory for tpu_custom_call.1']
    #allocation4 [shape = 's32[2]{0}', space=sflag, size = 0x8, scoped, tag = 'scoped memory for tpu_custom_call.1']
    #allocation5 [shape = 'u8[8192]{0}', space=vmem, size = 0x2000, scoped, tag = 'output window, operand 0']
    %11 = vsyncpa [#allocation3], 0
    %12 = vsyncpa [#allocation4], 0
    %s13 = scalar_lea.sflag [#allocation4], 1
    %14 = vsyncpa %s13, 0
    loop: start=0, step=1, limit=4
    $region2: #{tpu_custom_call.1} parent=1 // loop_pre_header
      _
    $region3: #{tpu_custom_call.1} parent=1 // loop_header
      %s16 = sphi 0, %s20
      %p17 = scmp.ge.s32.totalorder %s16, 4
      %s26 = sphi 0, %s28
      %s29 = sphi 0, %s26
      %s30 = sphi 0, %s29
      %s46 = sphi 0, %s30
      %s50 = sphi 0, %s50
      %s52 = sphi 0, %s50
      %s53 = sphi 0, %s52
      %s67 = sphi 0, %s53
      %s71 = sphi 0, %s71
      %s73 = sphi 0, %s71
      %s74 = sphi 0, %s73
      %s88 = sphi 0, %s74
      %s92 = sphi 0, %s92
      %s94 = sphi 0, %s92
      %s95 = sphi 0, %s94
      %s109 = sphi 0, %s95
      %s113 = sphi 0, %s113
      %s115 = sphi 0, %s113
      %s116 = sphi 0, %s115
      %s130 = sphi 0, %s116
      %s134 = sphi 0, %s134
      %s136 = sphi 0, %s134
      %s137 = sphi 0, %s136
      %s151 = sphi 0, %s137
      %s157 = sphi 0, %s159
      %s160 = sphi 0, %s157
      %s161 = sphi 0, %s160
      %s177 = sphi 0, %s161
    $region4: #{tpu_custom_call.1} parent=1 // loop_header_branch
      %19 = sbr.rel (%p17) target = $region8
    $region5: #{tpu_custom_call.1} parent=1 // loop_body
      %s21 = ssub.s32 %s16, 1
      %s22 = ssub.s32 %s16, 2
      %s23 = sadd.s32 %s16, 1
      %s24 = ssub.s32 %s16, %s23
      %p25 = scmp.eq.s32.totalorder %s24, 0
      %s27 = sadd.s32 %s26, 1
      %s28 = scalar_select %p25, %s26, %s27
      %p31 = pneg %p25
      %p32 = scmp.eq.s32.totalorder %s16, 1
      %p33 = por %p31, %p32
      %p34 = scmp.ne.s32.totalorder %s26, %s29
      %p35 = scmp.eq.s32.totalorder %s16, 0
      %p36 = por %p34, %p35
      %p37 = scmp.ne.s32.totalorder %s26, %s29
      %p38 = scmp.eq.s32.totalorder %s21, 1
      %p39 = por %p37, %p38
      %p40 = scmp.ne.s32.totalorder %s29, %s30
      %p41 = scmp.eq.s32.totalorder %s21, 0
      %p42 = por %p40, %p41
      %p43 = scmp.ne.s32.totalorder %s29, %s30
      %p44 = scmp.eq.s32.totalorder %s22, 1
      %p45 = por %p43, %p44
      %p47 = scmp.ne.s32.totalorder %s30, %s46
      %p48 = scmp.eq.s32.totalorder %s22, 0
      %p49 = por %p47, %p48
      %s51 = sadd.s32 %s50, 1
      %p54 = scmp.eq.s32.totalorder %s16, 1
      %p55 = scmp.ne.s32.totalorder %s50, %s52
      %p56 = scmp.eq.s32.totalorder %s16, 0
      %p57 = por %p55, %p56
      %p58 = scmp.ne.s32.totalorder %s50, %s52
      %p59 = scmp.eq.s32.totalorder %s21, 1
      %p60 = por %p58, %p59
      %p61 = scmp.ne.s32.totalorder %s52, %s53
      %p62 = scmp.eq.s32.totalorder %s21, 0
      %p63 = por %p61, %p62
      %p64 = scmp.ne.s32.totalorder %s52, %s53
      %p65 = scmp.eq.s32.totalorder %s22, 1
      %p66 = por %p64, %p65
      %p68 = scmp.ne.s32.totalorder %s53, %s67
      %p69 = scmp.eq.s32.totalorder %s22, 0
      %p70 = por %p68, %p69
      %s72 = sadd.s32 %s71, 1
      %p75 = scmp.eq.s32.totalorder %s16, 1
      %p76 = scmp.ne.s32.totalorder %s71, %s73
      %p77 = scmp.eq.s32.totalorder %s16, 0
      %p78 = por %p76, %p77
      %p79 = scmp.ne.s32.totalorder %s71, %s73
      %p80 = scmp.eq.s32.totalorder %s21, 1
      %p81 = por %p79, %p80
      %p82 = scmp.ne.s32.totalorder %s73, %s74
      %p83 = scmp.eq.s32.totalorder %s21, 0
      %p84 = por %p82, %p83
      %p85 = scmp.ne.s32.totalorder %s73, %s74
      %p86 = scmp.eq.s32.totalorder %s22, 1
      %p87 = por %p85, %p86
      %p89 = scmp.ne.s32.totalorder %s74, %s88
      %p90 = scmp.eq.s32.totalorder %s22, 0
      %p91 = por %p89, %p90
      %s93 = sadd.s32 %s92, 1
      %p96 = scmp.eq.s32.totalorder %s16, 1
      %p97 = scmp.ne.s32.totalorder %s92, %s94
      %p98 = scmp.eq.s32.totalorder %s16, 0
      %p99 = por %p97, %p98
      %p100 = scmp.ne.s32.totalorder %s92, %s94
      %p101 = scmp.eq.s32.totalorder %s21, 1
      %p102 = por %p100, %p101
      %p103 = scmp.ne.s32.totalorder %s94, %s95
      %p104 = scmp.eq.s32.totalorder %s21, 0
      %p105 = por %p103, %p104
      %p106 = scmp.ne.s32.totalorder %s94, %s95
      %p107 = scmp.eq.s32.totalorder %s22, 1
      %p108 = por %p106, %p107
      %p110 = scmp.ne.s32.totalorder %s95, %s109
      %p111 = scmp.eq.s32.totalorder %s22, 0
      %p112 = por %p110, %p111
      %s114 = sadd.s32 %s113, 1
      %p117 = scmp.eq.s32.totalorder %s16, 1
      %p118 = scmp.ne.s32.totalorder %s113, %s115
      %p119 = scmp.eq.s32.totalorder %s16, 0
      %p120 = por %p118, %p119
      %p121 = scmp.ne.s32.totalorder %s113, %s115
      %p122 = scmp.eq.s32.totalorder %s21, 1
      %p123 = por %p121, %p122
      %p124 = scmp.ne.s32.totalorder %s115, %s116
      %p125 = scmp.eq.s32.totalorder %s21, 0
      %p126 = por %p124, %p125
      %p127 = scmp.ne.s32.totalorder %s115, %s116
      %p128 = scmp.eq.s32.totalorder %s22, 1
      %p129 = por %p127, %p128
      %p131 = scmp.ne.s32.totalorder %s116, %s130
      %p132 = scmp.eq.s32.totalorder %s22, 0
      %p133 = por %p131, %p132
      %s135 = sadd.s32 %s134, 1
      %p138 = scmp.eq.s32.totalorder %s16, 1
      %p139 = scmp.ne.s32.totalorder %s134, %s136
      %p140 = scmp.eq.s32.totalorder %s16, 0
      %p141 = por %p139, %p140
      %p142 = scmp.ne.s32.totalorder %s134, %s136
      %p143 = scmp.eq.s32.totalorder %s21, 1
      %p144 = por %p142, %p143
      %p145 = scmp.ne.s32.totalorder %s136, %s137
      %p146 = scmp.eq.s32.totalorder %s21, 0
      %p147 = por %p145, %p146
      %p148 = scmp.ne.s32.totalorder %s136, %s137
      %p149 = scmp.eq.s32.totalorder %s22, 1
      %p150 = por %p148, %p149
      %p152 = scmp.ne.s32.totalorder %s137, %s151
      %p153 = scmp.eq.s32.totalorder %s22, 0
      %p154 = por %p152, %p153
      %s155 = ssub.s32 %s16, %s23
      %p156 = scmp.eq.s32.totalorder %s155, 0
      %s158 = sadd.s32 %s157, 1
      %s159 = scalar_select %p156, %s157, %s158
      %p162 = pneg %p156
      %p163 = scmp.eq.s32.totalorder %s16, 1
      %p164 = por %p162, %p163
      %p165 = scmp.ne.s32.totalorder %s157, %s160
      %p166 = scmp.eq.s32.totalorder %s16, 0
      %p167 = por %p165, %p166
      %p168 = scmp.ne.s32.totalorder %s157, %s160
      %p169 = scmp.eq.s32.totalorder %s21, 1
      %p170 = por %p168, %p169
      %p171 = scmp.ne.s32.totalorder %s160, %s161
      %p172 = scmp.eq.s32.totalorder %s21, 0
      %p173 = por %p171, %p172
      %p174 = scmp.ne.s32.totalorder %s160, %s161
      %p175 = scmp.eq.s32.totalorder %s22, 1
      %p176 = por %p174, %p175
      %p178 = scmp.ne.s32.totalorder %s161, %s177
      %p179 = scmp.eq.s32.totalorder %s22, 0
      %p180 = por %p178, %p179
      %p181 = scmp.le.s32.totalorder 1, %s16
      %p182 = scmp.lt.s32.totalorder %s16, 3
      %p183 = pnand %p181, %p182
      %p184 = pneg %p183
      // Predicated region
      $region9: #{tpu_custom_call.1} parent=5 // pred_check
        _
      $region10: #{tpu_custom_call.1} parent=5 // pred_check_branch
        %186 = sbr.rel (%p183) target = $region12
      $region11: #{tpu_custom_call.1} parent=5 // pred_region
        %s187 = ssub.s32 %s16, 1
        // Predicated region
        $region13: #{tpu_custom_call.1} parent=11 // pred_check
          %p188 = pneg %p63
        $region14: #{tpu_custom_call.1} parent=11 // pred_check_branch
          %190 = sbr.rel (%p188) target = $region16
        $region15: #{tpu_custom_call.1} parent=11 // pred_region
          _
        $region16: #{tpu_custom_call.1} parent=11 // pred_fallthru
          _
        // Predicated region
        $region17: #{tpu_custom_call.1} parent=11 // pred_check
          %p191 = pneg %p84
        $region18: #{tpu_custom_call.1} parent=11 // pred_check_branch
          %193 = sbr.rel (%p191) target = $region20
        $region19: #{tpu_custom_call.1} parent=11 // pred_region
          _
        $region20: #{tpu_custom_call.1} parent=11 // pred_fallthru
          _
        // Predicated region
        $region21: #{tpu_custom_call.1} parent=11 // pred_check
          %p194 = pneg %p105
        $region22: #{tpu_custom_call.1} parent=11 // pred_check_branch
          %196 = sbr.rel (%p194) target = $region24
        $region23: #{tpu_custom_call.1} parent=11 // pred_region
          %s198 = ssub.s32 4096, 4096
          %199 = vsyncadd [#allocation3], %s198
          %s200 = sshll.u32 [#allocation2], 4
          %s201 = int_to_ptr.vmem [resolvable:$true] %s200
          %206 = dma.hbm_to_vmem [thread:$0]  %s3, 4096, %s201, [#allocation3], 128, 128, 8
        $region24: #{tpu_custom_call.1} parent=11 // pred_fallthru
          _
        // Predicated region
        $region25: #{tpu_custom_call.1} parent=11 // pred_check
          %p207 = pneg %p126
        $region26: #{tpu_custom_call.1} parent=11 // pred_check_branch
          %209 = sbr.rel (%p207) target = $region28
        $region27: #{tpu_custom_call.1} parent=11 // pred_region
          _
        $region28: #{tpu_custom_call.1} parent=11 // pred_fallthru
          _
        // Predicated region
        $region29: #{tpu_custom_call.1} parent=11 // pred_check
          %p210 = pneg %p147
        $region30: #{tpu_custom_call.1} parent=11 // pred_check_branch
          %212 = sbr.rel (%p210) target = $region32
        $region31: #{tpu_custom_call.1} parent=11 // pred_region
          _
        $region32: #{tpu_custom_call.1} parent=11 // pred_fallthru
          _
      $region12: #{tpu_custom_call.1} parent=5 // pred_fallthru
        _
      %p213 = scmp.lt.s32.totalorder %s16, 2
      // Predicated region
      $region33: #{tpu_custom_call.1} parent=5 // pred_check
        %p214 = pneg %p213
      $region34: #{tpu_custom_call.1} parent=5 // pred_check_branch
        %216 = sbr.rel (%p214) target = $region36
      $region35: #{tpu_custom_call.1} parent=5 // pred_region
        // Predicated region
        $region37: #{tpu_custom_call.1} parent=35 // pred_check
          %p217 = pneg %p36
        $region38: #{tpu_custom_call.1} parent=35 // pred_check_branch
          %219 = sbr.rel (%p217) target = $region40
        $region39: #{tpu_custom_call.1} parent=35 // pred_region
          %p220 = scmp.lt.s32.totalorder %s16, 1
          %s221 = scalar_select %p220, %s16, 1
          %s222 = smul.addr %s221, 8
          %s223 = scalar_lea.vmem %s0, %s222
        $region40: #{tpu_custom_call.1} parent=35 // pred_fallthru
          _
      $region36: #{tpu_custom_call.1} parent=5 // pred_fallthru
        _
      %p224 = scmp.le.s32.totalorder 1, %s16
      %p225 = scmp.lt.s32.totalorder %s16, 3
      %p226 = pnand %p224, %p225
      %p227 = pneg %p226
      // Predicated region
      $region41: #{tpu_custom_call.1} parent=5 // pred_check
        _
      $region42: #{tpu_custom_call.1} parent=5 // pred_check_branch
        %229 = sbr.rel (%p226) target = $region44
      $region43: #{tpu_custom_call.1} parent=5 // pred_region
        %s230 = ssub.s32 %s16, 1
        // Predicated region
        $region45: #{tpu_custom_call.1} parent=43 // pred_check
          %p231 = pneg %p105
        $region46: #{tpu_custom_call.1} parent=43 // pred_check_branch
          %233 = sbr.rel (%p231) target = $region48
        $region47: #{tpu_custom_call.1} parent=43 // pred_region
          %234 = dma.done [#allocation3], 4096
        $region48: #{tpu_custom_call.1} parent=43 // pred_fallthru
          _
        %p235 = scmp.lt.s32.totalorder %s21, 1
        %s236 = scalar_select %p235, %s21, 1
        %s237 = smul.addr %s236, 8
        %s238 = scalar_lea.vmem %s0, %s237
        %p239 = pneg %p42
        %p240 = pneg %p39
        %p241 = pneg %p63
        %p242 = pneg %p60
        %p243 = pneg %p84
        %p244 = pneg %p81
        %p245 = pneg %p105
        %p246 = pneg %p102
        %p247 = pneg %p126
        %p248 = pneg %p123
        %p249 = pneg %p147
        %p250 = pneg %p144
        %p251 = pneg %p173
        %p252 = pneg %p170
        %s253 = sand.u32 %s160, 1
        %s254 = scalar_lea.sflag [#allocation4], %s253
        %s255 = sand.u32 %s160, 1
        %s256 = smul.addr %s255, 8
        %s257 = scalar_lea.vmem [#allocation5], %s256
        %p258 = scmp.lt.s32.totalorder %s21, 1
        %s259 = scalar_select %p258, %s21, 1
        %s260 = smul.addr %s259, 8
        %s261 = scalar_lea.vmem %s0, %s260
        %v263 = vld [vmem:[%s261] sm:$0xff]
        %v264 = vmul.f32 %v263, %v263
        %vm265 = vcmask 261120
        %v266 = vsel %vm265, %v264, 0.0
        %267 = vadd.xlane.f32.xlu0 %v266
        %v268 = vpop.xlane.xlu0 %267
        %v269 = vrcp.pop 32.0
        %v270 = vmul.f32 %v268, %v269
        %v271 = vadd.f32 %v270, 1e-08
        %v272 = vrsqrt.pop %v271
        %v273 = vmul.f32 %v263, %v272
        %v274 = vand.u32 2147483647, %v273
        %v275 = vsel %vm265, %v274, -inf
        %276 = vmax.xlane.f32.xlu0 %v275
        %v277 = vpop.xlane.xlu0 %276
        %v278 = vmax.f32 %v277, 1e-05
        %v279 = vrcp.pop %v278
        %v280 = vmul.f32 %v279, 127.0
        %v281 = vmul.f32 %v273, %v280
        %v282 = vround.ne.pseudo %v281
        %v283 = vmax.f32 %v282, -128.0
        %v284 = vmin.f32 %v283, 127.0
        %v285 = vmul.f32 %v278, 0.007874016
        %v286 = vpack.c.bf16 %v284, %v284
        %v287 = vld [vmem:[%s1] sm:$0xff]
        %v288 = vld [vmem:[%s1 + $0x8] sm:$0xff]
        %v289 = vld [vmem:[%s1 + $0x10] sm:$0xff]
        %v290 = vld [vmem:[%s1 + $0x18] sm:$0xff]
        %v295 = vunpack.c.l.b16 %v287
        %v296 = vunpack.c.h.b16 %v287
        %v297 = vunpack.c.l.b16 %v288
        %v298 = vunpack.c.h.b16 %v288
        %v299 = vunpack.c.l.b16 %v289
        %v300 = vunpack.c.h.b16 %v289
        %v301 = vunpack.c.l.b16 %v290
        %v302 = vunpack.c.h.b16 %v290
        %v303 = vpack.c.b16 %v297, %v295
        %v304 = vpack.c.b16 %v298, %v296
        %v305 = vpack.c.b16 %v301, %v299
        %v306 = vpack.c.b16 %v302, %v300
        %v312 = vsel %vm265, %v286, 0
        %314 = vmatprep.subr.bf16.mxu0 %v304
        %315 = vmatpush1.bf16.msra.mxu0 %v303
        %316 = vmatprep.subr.bf16.mxu0 %v306
        %317 = vmatpush1.bf16.msra.mxu0 %v305
        %318 = vmatprep.subr.bf16.mxu0 0
        %319 = vmatpush1.bf16.msra.mxu0 0
        %320 = vmatprep.subr.bf16.mxu0 0
        %321 = vmatpush1.bf16.msra.mxu0 0
        %322 = vmatprep.subr.bf16.mxu0 0
        %323 = vmatpush1.bf16.msra.mxu0 0
        %324 = vmatprep.subr.bf16.mxu0 0
        %325 = vmatpush1.bf16.msra.mxu0 0
        %326 = vmatprep.subr.bf16.mxu0 0
        %327 = vmatpush1.bf16.msra.mxu0 0
        %328 = vmatprep.subr.bf16.mxu0 0
        %329 = vmatpush1.bf16.msra.mxu0 0
        %330 = vmatprep.subr.bf16.mxu0 0
        %331 = vmatpush1.bf16.msra.mxu0 0
        %332 = vmatprep.subr.bf16.mxu0 0
        %333 = vmatpush1.bf16.msra.mxu0 0
        %334 = vmatprep.subr.bf16.mxu0 0
        %335 = vmatpush1.bf16.msra.mxu0 0
        %336 = vmatprep.subr.bf16.mxu0 0
        %337 = vmatpush1.bf16.msra.mxu0 0
        %338 = vmatprep.subr.bf16.mxu0 0
        %339 = vmatpush1.bf16.msra.mxu0 0
        %340 = vmatprep.subr.bf16.mxu0 0
        %341 = vmatpush1.bf16.msra.mxu0 0
        %342 = vmatprep.subr.bf16.mxu0 0
        %343 = vmatpush1.bf16.msra.mxu0 0
        %344 = vmatprep.subr.bf16.mxu0 0
        %345 = vmatpush1.bf16.msra.mxu0 0
        %346 = vmatprep.mubr.bf16.mxu0 0
        %347 = vmatmul.mubr.bf16.gmra.mrb[0].mxu0 %v312
        %v348 = vpop.f32.mrb[0].mxu0
        %v349 = vadd.f32 0.0, %v348
        %v350 = vpop.f32.mrb[0].mxu0
        %v351 = vadd.f32 0.0, %v350
        %v352 = vpop.f32.mrb[0].mxu0
        %v353 = vpop.f32.mrb[0].mxu0
        %354 = vdwg.mxu0
        %v355 = vmax.f32 %v349, 0.0
        %v356 = vmul.f32 %v355, %v285
        %v357 = vmul.f32 %v349, %v285
        %v358 = vmul.f32 %v351, %v285
        %v359 = vxor.u32 %v357, 2147483648
        %v360 = vxor.u32 %v358, 2147483648
        %v361 = vmul.f32 %v359, 1.442695
        %v362 = vpow.pop %v361
        %v363 = vmul.f32 %v360, 1.442695
        %v364 = vpow.pop %v363
        %v365 = vadd.f32 %v362, 1.0
        %v366 = vadd.f32 %v364, 1.0
        %v367 = vrcp.pop %v365
        %v368 = vmul.f32 1.0, %v367
        %v369 = vrcp.pop %v366
        %v370 = vmul.f32 1.0, %v369
        %v371 = vld [vmem:[%s4] sm:$0x1]
        %v372 = vld [vmem:[#allocation2] sm:$0xff]
        %v373 = vld [vmem:[#allocation2 + $0x8] sm:$0xff]
        %v374 = vld [vmem:[#allocation2 + $0x10] sm:$0xff]
        %v375 = vld [vmem:[#allocation2 + $0x18] sm:$0xff]
        %v376 = vld [vmem:[#allocation2 + $0x20] sm:$0xff]
        %v377 = vld [vmem:[#allocation2 + $0x28] sm:$0xff]
        %v378 = vld [vmem:[#allocation2 + $0x30] sm:$0xff]
        %v379 = vld [vmem:[#allocation2 + $0x38] sm:$0xff]
        %v380 = vld [vmem:[#allocation2 + $0x40] sm:$0xff]
        %v381 = vld [vmem:[#allocation2 + $0x48] sm:$0xff]
        %v382 = vld [vmem:[#allocation2 + $0x50] sm:$0xff]
        %v383 = vld [vmem:[#allocation2 + $0x58] sm:$0xff]
        %v384 = vld [vmem:[#allocation2 + $0x60] sm:$0xff]
        %v385 = vld [vmem:[#allocation2 + $0x68] sm:$0xff]
        %v386 = vld [vmem:[#allocation2 + $0x70] sm:$0xff]
        %v387 = vld [vmem:[#allocation2 + $0x78] sm:$0xff]
        %390 = vrot.lane.b32.xlu0 %v368, 64
        %v391 = vpop.permute.xlu0 %390
        %392 = vrot.lane.b32.xlu0 %v370, 64
        %v393 = vpop.permute.xlu0 %392
        %vm394 = vcmask 523264
        %v395 = vsel %vm394, %v391, %v393
        %397 = vmatprep.subr.mxu0 0.0
        %398 = vmatpush1.msra.mxu0 %v372
        %399 = vmatprep.subr.mxu0 0.0
        %400 = vmatpush1.msra.mxu0 %v373
        %401 = vmatprep.subr.mxu0 0.0
        %402 = vmatpush1.msra.mxu0 %v374
        %403 = vmatprep.subr.mxu0 0.0
        %404 = vmatpush1.msra.mxu0 %v375
        %405 = vmatprep.subr.mxu0 0.0
        %406 = vmatpush1.msra.mxu0 %v376
        %407 = vmatprep.subr.mxu0 0.0
        %408 = vmatpush1.msra.mxu0 %v377
        %409 = vmatprep.subr.mxu0 0.0
        %410 = vmatpush1.msra.mxu0 %v378
        %411 = vmatprep.subr.mxu0 0.0
        %412 = vmatpush1.msra.mxu0 %v379
        %413 = vmatprep.subr.mxu0 0.0
        %414 = vmatpush1.msra.mxu0 %v380
        %415 = vmatprep.subr.mxu0 0.0
        %416 = vmatpush1.msra.mxu0 %v381
        %417 = vmatprep.subr.mxu0 0.0
        %418 = vmatpush1.msra.mxu0 %v382
        %419 = vmatprep.subr.mxu0 0.0
        %420 = vmatpush1.msra.mxu0 %v383
        %421 = vmatprep.subr.mxu0 0.0
        %422 = vmatpush1.msra.mxu0 %v384
        %423 = vmatprep.subr.mxu0 0.0
        %424 = vmatpush1.msra.mxu0 %v385
        %425 = vmatprep.subr.mxu0 0.0
        %426 = vmatpush1.msra.mxu0 %v386
        %427 = vmatprep.subr.mxu0 0.0
        %428 = vmatpush1.msra.mxu0 %v387
        %429 = vmatprep.subr.mxu0 0.0
        %430 = vmatpush1.msra.mxu0 0.0
        %431 = vmatprep.subr.mxu0 0.0
        %432 = vmatpush1.msra.mxu0 0.0
        %433 = vmatprep.subr.mxu0 0.0
        %434 = vmatpush1.msra.mxu0 0.0
        %435 = vmatprep.subr.mxu0 0.0
        %436 = vmatpush1.msra.mxu0 0.0
        %437 = vmatprep.subr.mxu0 0.0
        %438 = vmatpush1.msra.mxu0 0.0
        %439 = vmatprep.subr.mxu0 0.0
        %440 = vmatpush1.msra.mxu0 0.0
        %441 = vmatprep.subr.mxu0 0.0
        %442 = vmatpush1.msra.mxu0 0.0
        %443 = vmatprep.subr.mxu0 0.0
        %444 = vmatpush1.msra.mxu0 0.0
        %445 = vmatprep.subr.mxu0 0.0
        %446 = vmatpush1.msra.mxu0 0.0
        %447 = vmatprep.subr.mxu0 0.0
        %448 = vmatpush1.msra.mxu0 0.0
        %449 = vmatprep.subr.mxu0 0.0
        %450 = vmatpush1.msra.mxu0 0.0
        %451 = vmatprep.subr.mxu0 0.0
        %452 = vmatpush1.msra.mxu0 0.0
        %453 = vmatprep.subr.mxu0 0.0
        %454 = vmatpush1.msra.mxu0 0.0
        %455 = vmatprep.subr.mxu0 0.0
        %456 = vmatpush1.msra.mxu0 0.0
        %457 = vmatprep.subr.mxu0 0.0
        %458 = vmatpush1.msra.mxu0 0.0
        %459 = vmatprep.subr.mxu0 0.0
        %460 = vmatpush1.msra.mxu0 0.0
        %461 = vmatprep.mubr.f32.mxu0 0.0
        %462 = vmatmul.mubr.f32.gmra.mrb[0].mxu0 %v395
        %v463 = vpop.f32.mrb[0].mxu0
        %v464 = vadd.f32 0.0, %v463
        %v465 = vpop.f32.mrb[0].mxu0
        %466 = vdwg.mxu0
        %v468 = vlaneseq
        %v469 = vshrl.u32 %v468, 7
        %v470 = vsub.s32 0, %v469
        %v471 = vrot.slane %v371, %v470
        %v473 = vadd.f32 %v471, %v464
        %s474 = scalar_lea.vmem %s4, 1
        %v475 = vld [vmem:[%s474] sm:$0x1]
        %s476 = scalar_lea.vmem [#allocation2], 128
        %v477 = vld [vmem:[%s476] sm:$0xff]
        %v478 = vld [vmem:[%s476 + $0x8] sm:$0xff]
        %v479 = vld [vmem:[%s476 + $0x10] sm:$0xff]
        %v480 = vld [vmem:[%s476 + $0x18] sm:$0xff]
        %v481 = vld [vmem:[%s476 + $0x20] sm:$0xff]
        %v482 = vld [vmem:[%s476 + $0x28] sm:$0xff]
        %v483 = vld [vmem:[%s476 + $0x30] sm:$0xff]
        %v484 = vld [vmem:[%s476 + $0x38] sm:$0xff]
        %v485 = vld [vmem:[%s476 + $0x40] sm:$0xff]
        %v486 = vld [vmem:[%s476 + $0x48] sm:$0xff]
        %v487 = vld [vmem:[%s476 + $0x50] sm:$0xff]
        %v488 = vld [vmem:[%s476 + $0x58] sm:$0xff]
        %v489 = vld [vmem:[%s476 + $0x60] sm:$0xff]
        %v490 = vld [vmem:[%s476 + $0x68] sm:$0xff]
        %v491 = vld [vmem:[%s476 + $0x70] sm:$0xff]
        %v492 = vld [vmem:[%s476 + $0x78] sm:$0xff]
        %493 = vmatprep.subr.mxu0 0.0
        %494 = vmatpush1.msra.mxu0 %v477
        %495 = vmatprep.subr.mxu0 0.0
        %496 = vmatpush1.msra.mxu0 %v478
        %497 = vmatprep.subr.mxu0 0.0
        %498 = vmatpush1.msra.mxu0 %v479
        %499 = vmatprep.subr.mxu0 0.0
        %500 = vmatpush1.msra.mxu0 %v480
        %501 = vmatprep.subr.mxu0 0.0
        %502 = vmatpush1.msra.mxu0 %v481
        %503 = vmatprep.subr.mxu0 0.0
        %504 = vmatpush1.msra.mxu0 %v482
        %505 = vmatprep.subr.mxu0 0.0
        %506 = vmatpush1.msra.mxu0 %v483
        %507 = vmatprep.subr.mxu0 0.0
        %508 = vmatpush1.msra.mxu0 %v484
        %509 = vmatprep.subr.mxu0 0.0
        %510 = vmatpush1.msra.mxu0 %v485
        %511 = vmatprep.subr.mxu0 0.0
        %512 = vmatpush1.msra.mxu0 %v486
        %513 = vmatprep.subr.mxu0 0.0
        %514 = vmatpush1.msra.mxu0 %v487
        %515 = vmatprep.subr.mxu0 0.0
        %516 = vmatpush1.msra.mxu0 %v488
        %517 = vmatprep.subr.mxu0 0.0
        %518 = vmatpush1.msra.mxu0 %v489
        %519 = vmatprep.subr.mxu0 0.0
        %520 = vmatpush1.msra.mxu0 %v490
        %521 = vmatprep.subr.mxu0 0.0
        %522 = vmatpush1.msra.mxu0 %v491
        %523 = vmatprep.subr.mxu0 0.0
        %524 = vmatpush1.msra.mxu0 %v492
        %525 = vmatprep.subr.mxu0 0.0
        %526 = vmatpush1.msra.mxu0 0.0
        %527 = vmatprep.subr.mxu0 0.0
        %528 = vmatpush1.msra.mxu0 0.0
        %529 = vmatprep.subr.mxu0 0.0
        %530 = vmatpush1.msra.mxu0 0.0
        %531 = vmatprep.subr.mxu0 0.0
        %532 = vmatpush1.msra.mxu0 0.0
        %533 = vmatprep.subr.mxu0 0.0
        %534 = vmatpush1.msra.mxu0 0.0
        %535 = vmatprep.subr.mxu0 0.0
        %536 = vmatpush1.msra.mxu0 0.0
        %537 = vmatprep.subr.mxu0 0.0
        %538 = vmatpush1.msra.mxu0 0.0
        %539 = vmatprep.subr.mxu0 0.0
        %540 = vmatpush1.msra.mxu0 0.0
        %541 = vmatprep.subr.mxu0 0.0
        %542 = vmatpush1.msra.mxu0 0.0
        %543 = vmatprep.subr.mxu0 0.0
        %544 = vmatpush1.msra.mxu0 0.0
        %545 = vmatprep.subr.mxu0 0.0
        %546 = vmatpush1.msra.mxu0 0.0
        %547 = vmatprep.subr.mxu0 0.0
        %548 = vmatpush1.msra.mxu0 0.0
        %549 = vmatprep.subr.mxu0 0.0
        %550 = vmatpush1.msra.mxu0 0.0
        %551 = vmatprep.subr.mxu0 0.0
        %552 = vmatpush1.msra.mxu0 0.0
        %553 = vmatprep.subr.mxu0 0.0
        %554 = vmatpush1.msra.mxu0 0.0
        %555 = vmatprep.subr.mxu0 0.0
        %556 = vmatpush1.msra.mxu0 0.0
        %557 = vmatprep.mubr.f32.mxu0 0.0
        %558 = vmatmul.mubr.f32.gmra.mrb[0].mxu0 %v395
        %v559 = vpop.f32.mrb[0].mxu0
        %v560 = vadd.f32 0.0, %v559
        %v561 = vpop.f32.mrb[0].mxu0
        %562 = vdwg.mxu0
        %v564 = vlaneseq
        %v565 = vshrl.u32 %v564, 7
        %v566 = vsub.s32 0, %v565
        %v567 = vrot.slane %v475, %v566
        %v569 = vadd.f32 %v567, %v560
        %v570 = vmul.f32 %v473, %v569
        %v571 = vld [vmem:[%s5] sm:$0xff]
        %v572 = vld [vmem:[%s5 + $0x8] sm:$0xff]
        %v573 = vld [vmem:[%s5 + $0x10] sm:$0xff]
        %v574 = vld [vmem:[%s5 + $0x18] sm:$0xff]
        %v575 = vld [vmem:[%s5 + $0x20] sm:$0xff]
        %v576 = vld [vmem:[%s5 + $0x28] sm:$0xff]
        %v577 = vld [vmem:[%s5 + $0x30] sm:$0xff]
        %v578 = vld [vmem:[%s5 + $0x38] sm:$0xff]
        %v579 = vld [vmem:[%s5 + $0x40] sm:$0xff]
        %v580 = vld [vmem:[%s5 + $0x48] sm:$0xff]
        %v581 = vld [vmem:[%s5 + $0x50] sm:$0xff]
        %v582 = vld [vmem:[%s5 + $0x58] sm:$0xff]
        %v583 = vld [vmem:[%s5 + $0x60] sm:$0xff]
        %v584 = vld [vmem:[%s5 + $0x68] sm:$0xff]
        %v585 = vld [vmem:[%s5 + $0x70] sm:$0xff]
        %v586 = vld [vmem:[%s5 + $0x78] sm:$0xff]
        %587 = vmatprep.subr.mxu0 0.0
        %588 = vmatpush1.msra.mxu0 %v571
        %589 = vmatprep.subr.mxu0 0.0
        %590 = vmatpush1.msra.mxu0 %v572
        %591 = vmatprep.subr.mxu0 0.0
        %592 = vmatpush1.msra.mxu0 %v573
        %593 = vmatprep.subr.mxu0 0.0
        %594 = vmatpush1.msra.mxu0 %v574
        %595 = vmatprep.subr.mxu0 0.0
        %596 = vmatpush1.msra.mxu0 %v575
        %597 = vmatprep.subr.mxu0 0.0
        %598 = vmatpush1.msra.mxu0 %v576
        %599 = vmatprep.subr.mxu0 0.0
        %600 = vmatpush1.msra.mxu0 %v577
        %601 = vmatprep.subr.mxu0 0.0
        %602 = vmatpush1.msra.mxu0 %v578
        %603 = vmatprep.subr.mxu0 0.0
        %604 = vmatpush1.msra.mxu0 %v579
        %605 = vmatprep.subr.mxu0 0.0
        %606 = vmatpush1.msra.mxu0 %v580
        %607 = vmatprep.subr.mxu0 0.0
        %608 = vmatpush1.msra.mxu0 %v581
        %609 = vmatprep.subr.mxu0 0.0
        %610 = vmatpush1.msra.mxu0 %v582
        %611 = vmatprep.subr.mxu0 0.0
        %612 = vmatpush1.msra.mxu0 %v583
        %613 = vmatprep.subr.mxu0 0.0
        %614 = vmatpush1.msra.mxu0 %v584
        %615 = vmatprep.subr.mxu0 0.0
        %616 = vmatpush1.msra.mxu0 %v585
        %617 = vmatprep.subr.mxu0 0.0
        %618 = vmatpush1.msra.mxu0 %v586
        %619 = vmatprep.subr.mxu0 0.0
        %620 = vmatpush1.msra.mxu0 0.0
        %621 = vmatprep.subr.mxu0 0.0
        %622 = vmatpush1.msra.mxu0 0.0
        %623 = vmatprep.subr.mxu0 0.0
        %624 = vmatpush1.msra.mxu0 0.0
        %625 = vmatprep.subr.mxu0 0.0
        %626 = vmatpush1.msra.mxu0 0.0
        %627 = vmatprep.subr.mxu0 0.0
        %628 = vmatpush1.msra.mxu0 0.0
        %629 = vmatprep.subr.mxu0 0.0
        %630 = vmatpush1.msra.mxu0 0.0
        %631 = vmatprep.subr.mxu0 0.0
        %632 = vmatpush1.msra.mxu0 0.0
        %633 = vmatprep.subr.mxu0 0.0
        %634 = vmatpush1.msra.mxu0 0.0
        %635 = vmatprep.subr.mxu0 0.0
        %636 = vmatpush1.msra.mxu0 0.0
        %637 = vmatprep.subr.mxu0 0.0
        %638 = vmatpush1.msra.mxu0 0.0
        %639 = vmatprep.subr.mxu0 0.0
        %640 = vmatpush1.msra.mxu0 0.0
        %641 = vmatprep.subr.mxu0 0.0
        %642 = vmatpush1.msra.mxu0 0.0
        %643 = vmatprep.subr.mxu0 0.0
        %644 = vmatpush1.msra.mxu0 0.0
        %645 = vmatprep.subr.mxu0 0.0
        %646 = vmatpush1.msra.mxu0 0.0
        %647 = vmatprep.subr.mxu0 0.0
        %648 = vmatpush1.msra.mxu0 0.0
        %649 = vmatprep.subr.mxu0 0.0
        %650 = vmatpush1.msra.mxu0 0.0
        %651 = vmatprep.mubr.f32.mxu0 0.0
        %652 = vmatmul.mubr.f32.gmra.mrb[0].mxu0 %v570
        %v653 = vpop.f32.mrb[0].mxu0
        %v654 = vadd.f32 0.0, %v653
        %v655 = vpop.f32.mrb[0].mxu0
        %656 = vdwg.mxu0
        %v657 = vmul.f32 %v356, %v654
        %v658 = vmul.f32 %v657, %v657
        %v659 = vsel %vm394, %v658, 0.0
        %660 = vadd.xlane.f32.xlu0 %v659
        %v661 = vpop.xlane.xlu0 %660
        %v662 = vrcp.pop 64.0
        %v663 = vmul.f32 %v661, %v662
        %v664 = vadd.f32 %v663, 1e-08
        %v665 = vrsqrt.pop %v664
        %v666 = vmul.f32 %v657, %v665
        %v667 = vand.u32 2147483647, %v666
        %v668 = vsel %vm394, %v667, -inf
        %669 = vmax.xlane.f32.xlu0 %v668
        %v670 = vpop.xlane.xlu0 %669
        %v671 = vmax.f32 %v670, 1e-05
        %v672 = vrcp.pop %v671
        %v673 = vmul.f32 %v672, 127.0
        %v674 = vmul.f32 %v666, %v673
        %v675 = vround.ne.pseudo %v674
        %v676 = vmax.f32 %v675, -128.0
        %v677 = vmin.f32 %v676, 127.0
        %v678 = vmul.f32 %v671, 0.007874016
        %v679 = vpack.c.bf16 %v677, %v677
        %v680 = vld [vmem:[%s2] sm:$0xf]
        %v681 = vld [vmem:[%s2 + $0x4] sm:$0xf]
        %v682 = vld [vmem:[%s2 + $0x8] sm:$0xf]
        %v683 = vld [vmem:[%s2 + $0xc] sm:$0xf]
        %v684 = vld [vmem:[%s2 + $0x10] sm:$0xf]
        %v685 = vld [vmem:[%s2 + $0x14] sm:$0xf]
        %v686 = vld [vmem:[%s2 + $0x18] sm:$0xf]
        %v687 = vld [vmem:[%s2 + $0x1c] sm:$0xf]
        %v696 = vunpack.c.l.b16 %v680
        %v697 = vunpack.c.l.b16 %v681
        %v698 = vunpack.c.l.b16 %v682
        %v699 = vunpack.c.l.b16 %v683
        %v700 = vunpack.c.l.b16 %v684
        %v701 = vunpack.c.l.b16 %v685
        %v702 = vunpack.c.l.b16 %v686
        %v703 = vunpack.c.l.b16 %v687
        %v704 = vpack.c.b16 %v697, %v696
        %v705 = vpack.c.b16 %v699, %v698
        %v706 = vpack.c.b16 %v701, %v700
        %v707 = vpack.c.b16 %v703, %v702
        %v713 = vsel %vm394, %v679, 0
        %715 = vmatprep.subr.bf16.mxu0 0
        %716 = vmatpush1.bf16.msra.mxu0 %v704
        %717 = vmatprep.subr.bf16.mxu0 0
        %718 = vmatpush1.bf16.msra.mxu0 %v705
        %719 = vmatprep.subr.bf16.mxu0 0
        %720 = vmatpush1.bf16.msra.mxu0 %v706
        %721 = vmatprep.subr.bf16.mxu0 0
        %722 = vmatpush1.bf16.msra.mxu0 %v707
        %723 = vmatprep.subr.bf16.mxu0 0
        %724 = vmatpush1.bf16.msra.mxu0 0
        %725 = vmatprep.subr.bf16.mxu0 0
        %726 = vmatpush1.bf16.msra.mxu0 0
        %727 = vmatprep.subr.bf16.mxu0 0
        %728 = vmatpush1.bf16.msra.mxu0 0
        %729 = vmatprep.subr.bf16.mxu0 0
        %730 = vmatpush1.bf16.msra.mxu0 0
        %731 = vmatprep.subr.bf16.mxu0 0
        %732 = vmatpush1.bf16.msra.mxu0 0
        %733 = vmatprep.subr.bf16.mxu0 0
        %734 = vmatpush1.bf16.msra.mxu0 0
        %735 = vmatprep.subr.bf16.mxu0 0
        %736 = vmatpush1.bf16.msra.mxu0 0
        %737 = vmatprep.subr.bf16.mxu0 0
        %738 = vmatpush1.bf16.msra.mxu0 0
        %739 = vmatprep.subr.bf16.mxu0 0
        %740 = vmatpush1.bf16.msra.mxu0 0
        %741 = vmatprep.subr.bf16.mxu0 0
        %742 = vmatpush1.bf16.msra.mxu0 0
        %743 = vmatprep.subr.bf16.mxu0 0
        %744 = vmatpush1.bf16.msra.mxu0 0
        %745 = vmatprep.subr.bf16.mxu0 0
        %746 = vmatpush1.bf16.msra.mxu0 0
        %747 = vmatprep.mubr.bf16.mxu0 0
        %748 = vmatmul.mubr.bf16.gmra.mrb[0].mxu0 %v713
        %v749 = vpop.f32.mrb[0].mxu0
        %v750 = vadd.f32 0.0, %v749
        %v751 = vpop.f32.mrb[0].mxu0
        %v752 = vpop.f32.mrb[0].mxu0
        %v753 = vpop.f32.mrb[0].mxu0
        %754 = vdwg.mxu0
        %v755 = vmul.f32 %v750, %v678
        %756 = vst.msk [vmem:[%s257] sm:$0xff] %vm265, %v755
        %s757 = sand.u32 %s160, 1
        %s758 = scalar_lea.sflag [#allocation4], %s757
        %s759 = sand.u32 %s160, 1
        %s760 = smul.addr %s759, 8
        %s761 = scalar_lea.vmem [#allocation5], %s760
        // Predicated region
        $region49: #{tpu_custom_call.1} parent=43 // pred_check
          %p762 = pneg %p170
        $region50: #{tpu_custom_call.1} parent=43 // pred_check_branch
          %764 = sbr.rel (%p762) target = $region52
        $region51: #{tpu_custom_call.1} parent=43 // pred_region
          %s766 = ssub.s32 128, 128
          %767 = vsyncadd %s758, %s766
          %s768 = smul.addr %s21, 128
          %s769 = scalar_lea.hbm %s6, %s768
          %s771 = sshll.u32 %s761, 4
          %s772 = int_to_ptr.vmem [resolvable:$true] %s771
          %774 = dma.vmem_to_hbm [thread:$0]  %s772, 128, %s769, %s758
        $region52: #{tpu_custom_call.1} parent=43 // pred_fallthru
          _
      $region44: #{tpu_custom_call.1} parent=5 // pred_fallthru
        _
      %p775 = scmp.le.s32.totalorder 2, %s16
      // Predicated region
      $region53: #{tpu_custom_call.1} parent=5 // pred_check
        %p776 = pneg %p775
      $region54: #{tpu_custom_call.1} parent=5 // pred_check_branch
        %778 = sbr.rel (%p776) target = $region56
      $region55: #{tpu_custom_call.1} parent=5 // pred_region
        %s779 = ssub.s32 %s16, 2
        // Predicated region
        $region57: #{tpu_custom_call.1} parent=55 // pred_check
          %p780 = pneg %p176
        $region58: #{tpu_custom_call.1} parent=55 // pred_check_branch
          %782 = sbr.rel (%p780) target = $region60
        $region59: #{tpu_custom_call.1} parent=55 // pred_region
          %s783 = sand.u32 %s161, 1
          %s784 = scalar_lea.sflag [#allocation4], %s783
          %s785 = sand.u32 %s161, 1
          %s786 = smul.addr %s785, 8
          %s787 = scalar_lea.vmem [#allocation5], %s786
          %788 = dma.done %s784, 128
        $region60: #{tpu_custom_call.1} parent=55 // pred_fallthru
          _
      $region56: #{tpu_custom_call.1} parent=5 // pred_fallthru
        _
    $region6: #{tpu_custom_call.1} parent=1 // loop_footer
      %s20 = sadd.s32 1, %s16
    $region7: #{tpu_custom_call.1} parent=1 // loop_footer_branch
      %15 = sbr.rel target = $region3
    $region8: #{tpu_custom_call.1} parent=1 // loop_exit
      _
    %789 = vsyncpa [#allocation3], 1
    %s790 = scalar_lea.sflag [#allocation3], 1
    %791 = vsyncpa %s790, 1
    %792 = vsyncpa [#allocation4], 1
    %s793 = scalar_lea.sflag [#allocation4], 1
    %794 = vsyncpa %s793, 1

</llo_original>
